<compile_context>
chip_gen: v7x
topology: tpu7x:2x2x1
jax: 0.10.0
libtpu: 0.0.40
codegen_flags: <defaults>
</compile_context>

<pallas_src>
import functools

import jax
import jax.numpy as jnp
from jax.experimental import pallas as pl
from jax.experimental.pallas import tpu as pltpu


# ----------------------------------------------------------------------------
# Fused kernel: all conv+BN+ReLU layers + Flatten/Linear/Sigmoid in one call
# ----------------------------------------------------------------------------
def _fused_disc_kernel(num_layers, counts, *refs):
    """Fully fused discriminator forward.

    refs layout (inputs, then the single output):
      refs[0]                   : A0   (M0, 4*Cin0)      bf16  hierarchically-ordered patches
      refs[1+3l .. 3+3l], l<L   : W_l  (4*C_{l-1}, C_l)  bf16  conv weight, rows = (dh, dw, cin)
                                  g_l  (1, C_l)          f32   BN gamma
                                  b_l  (1, C_l)          f32   BN beta
      refs[1+3L]                : FCW  (Mf, Cf)          f32   fc weight, per-row layout
      refs[2+3L]                : fcb  (1, 1)            f32
      refs[3+3L]                : SEL  (Mf, Mf)          bf16  per-sample row-group selector
      refs[4+3L]  (output)      : slab (Mf, 2*Cf)        f32   [:, :Cf]=lth feat, [:, Cf:]=sigmoid
    """
    a0_ref = refs[0]
    fcw_ref, fcb_ref, sel_ref, out_ref = refs[1 + 3 * num_layers:]

    feat = None
    for l in range(num_layers):
        w_ref, g_ref, b_ref = refs[1 + 3 * l: 4 + 3 * l]
        cin = w_ref.shape[0] // 4

        if l == 0:
            # Layer 0: input was patchified host-side -> a single MXU matmul with
            # M = N*(H/2)*(W/2) rows (vs. M=2 in the old dense-B formulation).
            y = jnp.dot(a0_ref[...], w_ref[...],
                        preferred_element_type=jnp.float32)
        else:
            # Block-major row order ==> the four 2x2-patch taps of this layer are
            # the four contiguous row-quarters of the previous feature map.
            # Conv = sum of 4 small matmuls; no transpose / gather / concat.
            rows = feat.shape[0] // 4
            y = None
            for j in range(4):                     # j = 2*dh + dw
                a_j = feat[j * rows:(j + 1) * rows, :].astype(jnp.bfloat16)
                w_j = w_ref[j * cin:(j + 1) * cin, :]
                p = jnp.dot(a_j, w_j, preferred_element_type=jnp.float32)
                y = p if y is None else y + p

        # BatchNorm2d (training-mode batch stats) + ReLU.  Channels are the lane
        # dim, so per-channel stats are plain column sums (no selector matmuls).
        inv_n = 1.0 / counts[l]
        mean = jnp.sum(y, axis=0, keepdims=True) * inv_n
        var = jnp.sum(y * y, axis=0, keepdims=True) * inv_n - mean * mean
        var = jnp.maximum(var, 0.0)                       # fp-cancellation guard
        scale = g_ref[...] * jax.lax.rsqrt(var + 1e-5)
        shift = b_ref[...] - mean * scale
        feat = jnp.maximum(y * scale + shift, 0.0)        # f32 epilogue (v5e-safe)

    # Flatten -> Linear(hidden, 1) -> Sigmoid.
    # logit(sample) = sum over that sample's rows/channels of feat * FCW.
    g = (feat * fcw_ref[...]).astype(jnp.bfloat16)        # (Mf, Cf)
    t = jnp.dot(sel_ref[...], g, preferred_element_type=jnp.float32)  # (Mf, Cf)
    logit = jnp.sum(t, axis=-1, keepdims=True) + fcb_ref[...]         # (Mf, 1)
    sig = jax.nn.sigmoid(logit)                           # constant within a sample

    cf = feat.shape[1]
    out_ref[:, :cf] = feat                                # lth features
    out_ref[:, cf:] = jnp.broadcast_to(sig, feat.shape)   # sigmoid, lane-padded


# ----------------------------------------------------------------------------
# Host-side (one-time / boundary) operand preparation
# ----------------------------------------------------------------------------
def calculate_channel_sizes(image_channels, max_filters, num_layers):
    sizes = [(image_channels, max_filters // (2 ** (num_layers - 1)))]
    for _ in range(1, num_layers):
        prev = sizes[-1][1]
        sizes.append((prev, prev * 2))
    return sizes


def build_patch_input(x_nchw, num_layers):
    """NCHW input -> layer-0 patch matrix A0 (M0, 4*C).

    Rows are layer-0 output positions in hierarchical / block-major order: the
    offsets consumed by layer 1 are outermost, then layer 2, ..., then (n, hf, wf).
    Columns are (dh, dw, cin), channel minor.  Requires kernel==stride==2, pad==0.
    """
    N, C, H, W = x_nchw.shape
    L = num_layers
    assert H % (1 << L) == 0 and W % (1 << L) == 0, "spatial dims must divide 2^L"
    hf, wf = H >> L, W >> L
    xr = x_nchw.reshape((N, C, hf) + (2,) * L + (wf,) + (2,) * L)
    n_ax, c_ax, hf_ax = 0, 1, 2
    wf_ax = 3 + L
    beta = lambda k: 3 + (L - 1 - k)          # h-offset bit consumed by layer k
    gamma = lambda k: 4 + L + (L - 1 - k)     # w-offset bit consumed by layer k
    perm = []
    for k in range(1, L):
        perm += [beta(k), gamma(k)]
    perm += [n_ax, hf_ax, wf_ax, beta(0), gamma(0), c_ax]
    xt = jnp.transpose(xr, perm)
    m0 = (4 ** (L - 1)) * N * hf * wf
    return xt.reshape(m0, 4 * C)


def init_params(key, image_channels, num_layers, max_filters,
                input_image_dimensions, kernel_size=2, stride=2, padding=0):
    """Synthetic PyTorch-layout parameters (Conv2d / BatchNorm2d / Linear)."""
    sizes = calculate_channel_sizes(image_channels, max_filters, num_layers)
    params = {"conv_w": [], "bn_gamma": [], "bn_beta": []}
    img = input_image_dimensions
    cout = sizes[-1][1]
    for (cin, cout) in sizes:
        key, k1 = jax.random.split(key)
        w = jax.random.normal(k1, (cout, cin, kernel_size, kernel_size),
                              jnp.float32) * 0.1
        params["conv_w"].append(w)
        params["bn_gamma"].append(jnp.ones((cout,), jnp.float32))
        params["bn_beta"].append(jnp.zeros((cout,), jnp.float32))
        img = (img - kernel_size + 2 * padding) // stride + 1
    hidden = cout * img * img
    key, k2, k3 = jax.random.split(key, 3)
    params["fc_w"] = jax.random.normal(k2, (1, hidden), jnp.float32) * 0.02
    params["fc_b"] = jax.random.normal(k3, (1,), jnp.float32) * 0.02
    return params


def prepare_operands(params, input_image_dimensions, batch_size):
    """One-time prep: (dh,dw,cin)-ordered conv weights in bf16, BN params as
    (1, C) rows, FC weight permuted from PyTorch (C,H,W) flatten order to the
    kernel's per-row (n,hf,wf)/channel-minor layout, plus the per-sample
    row-group selector for the final reduction."""
    L = len(params["conv_w"])
    ops = {"W": [], "gamma": [], "beta": []}
    img = input_image_dimensions
    for w, g, b in zip(params["conv_w"], params["bn_gamma"], params["bn_beta"]):
        cout, cin, kh, kw = w.shape
        assert kh == 2 and kw == 2, "fused kernel assumes kernel=stride=2, pad=0"
        wm = jnp.transpose(w, (2, 3, 1, 0)).reshape(kh * kw * cin, cout)
        ops["W"].append(wm.astype(jnp.bfloat16))
        ops["gamma"].append(g.reshape(1, cout).astype(jnp.float32))
        ops["beta"].append(b.reshape(1, cout).astype(jnp.float32))
        img //= 2
    cf = params["conv_w"][-1].shape[0]
    hf = img
    hw = hf * hf
    # fc weight: PyTorch flatten index = c*hw + pos  ->  FCW[pos, c]
    fcw = params["fc_w"].reshape(cf, hw).T                              # (hw, cf)
    ops["fcw"] = jnp.tile(fcw, (batch_size, 1)).astype(jnp.float32)     # (N*hw, cf)
    ops["fcb"] = params["fc_b"].reshape(1, 1).astype(jnp.float32)
    ops["sel"] = jnp.kron(jnp.eye(batch_size, dtype=jnp.float32),
                          jnp.ones((hw, hw), jnp.float32)).astype(jnp.bfloat16)
    return ops


# ----------------------------------------------------------------------------
# Forward pass (single gridless pallas_call)
# ----------------------------------------------------------------------------
@jax.jit
def vae_gan_discriminator_forward(x_nchw, ops):
    N, C, H, W = x_nchw.shape
    L = len(ops["W"])
    hf = H >> L
    hw = hf * hf
    cf = ops["gamma"][-1].shape[1]
    mf = N * hw

    # Boundary layout plumbing only: tiny XLA transpose of the raw input into the
    # block-major patch layout, bf16 for the MXU.
    a0 = build_patch_input(x_nchw, L).astype(jnp.bfloat16)

    inputs = [a0]
    counts = []
    flops = 0
    trans = mf
    m = a0.shape[0]
    for l in range(L):
        w, g, b = ops["W"][l], ops["gamma"][l], ops["beta"][l]
        inputs += [w, g, b]
        counts.append(float(m))                 # BN count = N*Ho*Wo rows
        flops += 2 * m * w.shape[0] * w.shape[1]
        trans += g.shape[1]                     # rsqrt per channel
        m //= 4
    inputs += [ops["fcw"], ops["fcb"], ops["sel"]]
    flops += 2 * mf * mf * cf

    bytes_accessed = int(sum(a.size * a.dtype.itemsize for a in inputs)
                         + mf * 2 * cf * 4)

    # No grid: a single invocation with whole operands resident in VMEM -- no
    # pipeline machinery, no double buffering (total footprint ~30 KiB).
    vmem = pl.BlockSpec(memory_space=pltpu.MemorySpace.VMEM)
    kernel = functools.partial(_fused_disc_kernel, L, tuple(counts))
    slab = pl.pallas_call(
        kernel,
        out_shape=jax.ShapeDtypeStruct((mf, 2 * cf), jnp.float32),
        in_specs=[vmem] * len(inputs),
        out_specs=vmem,
        cost_estimate=pl.CostEstimate(flops=int(flops),
                                      transcendentals=int(trans),
                                      bytes_accessed=bytes_accessed),
    )(*inputs)

    # Module semantics: lth_output is NCHW; this transpose is only on the returned
    # tensor (the FC already consumed the features inside the kernel).
    lth = jnp.transpose(slab[:, :cf].reshape(N, hf, hf, cf), (0, 3, 1, 2))
    out = slab[::hw, cf:cf + 1]                 # first row of each sample group
    return out, lth


# ----------------------------------------------------------------------------
# Pure-JAX reference (f32) for a correctness cross-check
# ----------------------------------------------------------------------------
def reference_forward(x, params):
    a = x
    for w, g, b in zip(params["conv_w"], params["bn_gamma"], params["bn_beta"]):
        a = jax.lax.conv_general_dilated(
            a, w, window_strides=(2, 2), padding="VALID",
            dimension_numbers=("NCHW", "OIHW", "NCHW"))
        mean = jnp.mean(a, axis=(0, 2, 3), keepdims=True)
        var = jnp.mean((a - mean) ** 2, axis=(0, 2, 3), keepdims=True)
        a = (a - mean) * jax.lax.rsqrt(var + 1e-5)
        a = a * g.reshape(1, -1, 1, 1) + b.reshape(1, -1, 1, 1)
        a = jnp.maximum(a, 0.0)
    lth = a
    flat = lth.reshape(lth.shape[0], -1)
    logits = flat @ params["fc_w"].T + params["fc_b"]
    return jax.nn.sigmoid(logits), lth


if __name__ == "__main__":
    # Small, module-consistent config: 3 input channels, 3 conv layers,
    # max_filters=64, 16x16 images, batch=2.
    IMAGE_CHANNELS = 3
    NUM_LAYERS = 3
    MAX_FILTERS = 64
    IMG_DIM = 16
    BATCH = 2

    key = jax.random.PRNGKey(0)
    key, kx = jax.random.split(key)
    x = jax.random.normal(kx, (BATCH, IMAGE_CHANNELS, IMG_DIM, IMG_DIM),
                          jnp.float32)
    params = init_params(key, IMAGE_CHANNELS, NUM_LAYERS, MAX_FILTERS, IMG_DIM)
    ops = prepare_operands(params, IMG_DIM, BATCH)

    output, lth_output = vae_gan_discriminator_forward(x, ops)
    jax.block_until_ready((output, lth_output))

    # Shape / range sanity (PyTorch module semantics).
    assert output.shape == (BATCH, 1)
    final_c = MAX_FILTERS
    final_hw = IMG_DIM // (2 ** NUM_LAYERS)
    assert lth_output.shape == (BATCH, final_c, final_hw, final_hw)
    assert bool(jnp.all((output >= 0.0) & (output <= 1.0)))

    # Numerical cross-check vs. f32 reference (bf16 matmul path => loose tol).
    ref_out, ref_lth = reference_forward(x, params)
    lth_err = float(jnp.max(jnp.abs(lth_output - ref_lth)))
    out_err = float(jnp.max(jnp.abs(output - ref_out)))
    assert lth_err < 0.25, f"lth_output mismatch: max abs err {lth_err}"
    assert out_err < 0.05, f"output mismatch: max abs err {out_err}"

    print("KERNEL_OK")
</pallas_src>

<mosaic_0001>
module attributes {stable_mosaic.version = 11 : i64} {
  func.func @_fused_disc_kernel(%arg0: memref<128x12xbf16, #tpu.memory_space<vmem>>, %arg1: memref<12x16xbf16, #tpu.memory_space<vmem>>, %arg2: memref<1x16xf32, #tpu.memory_space<vmem>>, %arg3: memref<1x16xf32, #tpu.memory_space<vmem>>, %arg4: memref<64x32xbf16, #tpu.memory_space<vmem>>, %arg5: memref<1x32xf32, #tpu.memory_space<vmem>>, %arg6: memref<1x32xf32, #tpu.memory_space<vmem>>, %arg7: memref<128x64xbf16, #tpu.memory_space<vmem>>, %arg8: memref<1x64xf32, #tpu.memory_space<vmem>>, %arg9: memref<1x64xf32, #tpu.memory_space<vmem>>, %arg10: memref<8x64xf32, #tpu.memory_space<vmem>>, %arg11: memref<1x1xf32, #tpu.memory_space<vmem>>, %arg12: memref<8x8xbf16, #tpu.memory_space<vmem>>, %arg13: memref<8x128xf32, #tpu.memory_space<vmem>>) attributes {dimension_semantics = [], scalar_prefetch = 0 : i64, scratch_operands = 0 : i64, tpu.core_type = #tpu.core_type<tc>} {
    %c0 = arith.constant 0 : index
    %c0_0 = arith.constant 0 : index
    %0 = vector.load %arg0[%c0, %c0_0] : memref<128x12xbf16, #tpu.memory_space<vmem>>, vector<128x12xbf16>
    %c0_1 = arith.constant 0 : index
    %c0_2 = arith.constant 0 : index
    %1 = vector.load %arg1[%c0_1, %c0_2] : memref<12x16xbf16, #tpu.memory_space<vmem>>, vector<12x16xbf16>
    %cst = arith.constant dense<0.000000e+00> : vector<128x16xf32>
    %2 = tpu.matmul %0, %1, %cst {dimension_numbers = #tpu.dot_dimension_numbers<[1], [0], [0], [1], [0, 0, 1, 1], [], []>} : vector<128x12xbf16>, vector<12x16xbf16>, vector<128x16xf32> -> vector<128x16xf32>
    %cst_3 = arith.constant dense<0.000000e+00> : vector<16xf32>
    %3 = vector.multi_reduction <add>, %2, %cst_3 [0] : vector<128x16xf32> to vector<16xf32>
    %4 = vector.shape_cast %3 : vector<16xf32> to vector<1x16xf32>
    %cst_4 = arith.constant 7.812500e-03 : f32
    %5 = vector.broadcast %cst_4 : f32 to vector<1x16xf32>
    %6 = arith.mulf %4, %5 : vector<1x16xf32>
    %7 = arith.mulf %2, %2 : vector<128x16xf32>
    %cst_5 = arith.constant dense<0.000000e+00> : vector<16xf32>
    %8 = vector.multi_reduction <add>, %7, %cst_5 [0] : vector<128x16xf32> to vector<16xf32>
    %9 = vector.shape_cast %8 : vector<16xf32> to vector<1x16xf32>
    %cst_6 = arith.constant 7.812500e-03 : f32
    %10 = vector.broadcast %cst_6 : f32 to vector<1x16xf32>
    %11 = arith.mulf %9, %10 : vector<1x16xf32>
    %12 = arith.mulf %6, %6 : vector<1x16xf32>
    %13 = arith.subf %11, %12 : vector<1x16xf32>
    %cst_7 = arith.constant 0.000000e+00 : f32
    %14 = vector.broadcast %cst_7 : f32 to vector<1x16xf32>
    %15 = arith.maximumf %13, %14 : vector<1x16xf32>
    %c0_8 = arith.constant 0 : index
    %c0_9 = arith.constant 0 : index
    %16 = vector.load %arg2[%c0_8, %c0_9] : memref<1x16xf32, #tpu.memory_space<vmem>>, vector<1x16xf32>
    %cst_10 = arith.constant 9.99999974E-6 : f32
    %17 = vector.broadcast %cst_10 : f32 to vector<1x16xf32>
    %18 = arith.addf %15, %17 : vector<1x16xf32>
    %19 = math.rsqrt %18 : vector<1x16xf32>
    %20 = arith.mulf %16, %19 : vector<1x16xf32>
    %c0_11 = arith.constant 0 : index
    %c0_12 = arith.constant 0 : index
    %21 = vector.load %arg3[%c0_11, %c0_12] : memref<1x16xf32, #tpu.memory_space<vmem>>, vector<1x16xf32>
    %22 = arith.mulf %6, %20 : vector<1x16xf32>
    %23 = arith.subf %21, %22 : vector<1x16xf32>
    %24 = vector.broadcast %20 : vector<1x16xf32> to vector<128x16xf32>
    %25 = arith.mulf %2, %24 : vector<128x16xf32>
    %26 = vector.broadcast %23 : vector<1x16xf32> to vector<128x16xf32>
    %27 = arith.addf %25, %26 : vector<128x16xf32>
    %cst_13 = arith.constant 0.000000e+00 : f32
    %28 = vector.broadcast %cst_13 : f32 to vector<128x16xf32>
    %29 = arith.maximumf %27, %28 : vector<128x16xf32>
    %30 = vector.extract_strided_slice %29 {offsets = [0, 0], sizes = [32, 16], strides = [1, 1]} : vector<128x16xf32> to vector<32x16xf32>
    %31 = arith.truncf %30 : vector<32x16xf32> to vector<32x16xbf16>
    %c0_14 = arith.constant 0 : index
    %c0_15 = arith.constant 0 : index
    %32 = vector.load %arg4[%c0_14, %c0_15] : memref<64x32xbf16, #tpu.memory_space<vmem>>, vector<16x32xbf16>
    %cst_16 = arith.constant dense<0.000000e+00> : vector<32x32xf32>
    %33 = tpu.matmul %31, %32, %cst_16 {dimension_numbers = #tpu.dot_dimension_numbers<[1], [0], [0], [1], [0, 0, 1, 1], [], []>} : vector<32x16xbf16>, vector<16x32xbf16>, vector<32x32xf32> -> vector<32x32xf32>
    %34 = vector.extract_strided_slice %29 {offsets = [32, 0], sizes = [32, 16], strides = [1, 1]} : vector<128x16xf32> to vector<32x16xf32>
    %35 = arith.truncf %34 : vector<32x16xf32> to vector<32x16xbf16>
    %c16 = arith.constant 16 : index
    %c0_17 = arith.constant 0 : index
    %36 = vector.load %arg4[%c16, %c0_17] : memref<64x32xbf16, #tpu.memory_space<vmem>>, vector<16x32xbf16>
    %cst_18 = arith.constant dense<0.000000e+00> : vector<32x32xf32>
    %37 = tpu.matmul %35, %36, %cst_18 {dimension_numbers = #tpu.dot_dimension_numbers<[1], [0], [0], [1], [0, 0, 1, 1], [], []>} : vector<32x16xbf16>, vector<16x32xbf16>, vector<32x32xf32> -> vector<32x32xf32>
    %38 = arith.addf %33, %37 : vector<32x32xf32>
    %39 = vector.extract_strided_slice %29 {offsets = [64, 0], sizes = [32, 16], strides = [1, 1]} : vector<128x16xf32> to vector<32x16xf32>
    %40 = arith.truncf %39 : vector<32x16xf32> to vector<32x16xbf16>
    %c32 = arith.constant 32 : index
    %c0_19 = arith.constant 0 : index
    %41 = vector.load %arg4[%c32, %c0_19] : memref<64x32xbf16, #tpu.memory_space<vmem>>, vector<16x32xbf16>
    %cst_20 = arith.constant dense<0.000000e+00> : vector<32x32xf32>
    %42 = tpu.matmul %40, %41, %cst_20 {dimension_numbers = #tpu.dot_dimension_numbers<[1], [0], [0], [1], [0, 0, 1, 1], [], []>} : vector<32x16xbf16>, vector<16x32xbf16>, vector<32x32xf32> -> vector<32x32xf32>
    %43 = arith.addf %38, %42 : vector<32x32xf32>
    %44 = vector.extract_strided_slice %29 {offsets = [96, 0], sizes = [32, 16], strides = [1, 1]} : vector<128x16xf32> to vector<32x16xf32>
    %45 = arith.truncf %44 : vector<32x16xf32> to vector<32x16xbf16>
    %c48 = arith.constant 48 : index
    %c0_21 = arith.constant 0 : index
    %46 = vector.load %arg4[%c48, %c0_21] : memref<64x32xbf16, #tpu.memory_space<vmem>>, vector<16x32xbf16>
    %cst_22 = arith.constant dense<0.000000e+00> : vector<32x32xf32>
    %47 = tpu.matmul %45, %46, %cst_22 {dimension_numbers = #tpu.dot_dimension_numbers<[1], [0], [0], [1], [0, 0, 1, 1], [], []>} : vector<32x16xbf16>, vector<16x32xbf16>, vector<32x32xf32> -> vector<32x32xf32>
    %48 = arith.addf %43, %47 : vector<32x32xf32>
    %cst_23 = arith.constant dense<0.000000e+00> : vector<32xf32>
    %49 = vector.multi_reduction <add>, %48, %cst_23 [0] : vector<32x32xf32> to vector<32xf32>
    %50 = vector.shape_cast %49 : vector<32xf32> to vector<1x32xf32>
    %cst_24 = arith.constant 3.125000e-02 : f32
    %51 = vector.broadcast %cst_24 : f32 to vector<1x32xf32>
    %52 = arith.mulf %50, %51 : vector<1x32xf32>
    %53 = arith.mulf %48, %48 : vector<32x32xf32>
    %cst_25 = arith.constant dense<0.000000e+00> : vector<32xf32>
    %54 = vector.multi_reduction <add>, %53, %cst_25 [0] : vector<32x32xf32> to vector<32xf32>
    %55 = vector.shape_cast %54 : vector<32xf32> to vector<1x32xf32>
    %cst_26 = arith.constant 3.125000e-02 : f32
    %56 = vector.broadcast %cst_26 : f32 to vector<1x32xf32>
    %57 = arith.mulf %55, %56 : vector<1x32xf32>
    %58 = arith.mulf %52, %52 : vector<1x32xf32>
    %59 = arith.subf %57, %58 : vector<1x32xf32>
    %cst_27 = arith.constant 0.000000e+00 : f32
    %60 = vector.broadcast %cst_27 : f32 to vector<1x32xf32>
    %61 = arith.maximumf %59, %60 : vector<1x32xf32>
    %c0_28 = arith.constant 0 : index
    %c0_29 = arith.constant 0 : index
    %62 = vector.load %arg5[%c0_28, %c0_29] : memref<1x32xf32, #tpu.memory_space<vmem>>, vector<1x32xf32>
    %cst_30 = arith.constant 9.99999974E-6 : f32
    %63 = vector.broadcast %cst_30 : f32 to vector<1x32xf32>
    %64 = arith.addf %61, %63 : vector<1x32xf32>
    %65 = math.rsqrt %64 : vector<1x32xf32>
    %66 = arith.mulf %62, %65 : vector<1x32xf32>
    %c0_31 = arith.constant 0 : index
    %c0_32 = arith.constant 0 : index
    %67 = vector.load %arg6[%c0_31, %c0_32] : memref<1x32xf32, #tpu.memory_space<vmem>>, vector<1x32xf32>
    %68 = arith.mulf %52, %66 : vector<1x32xf32>
    %69 = arith.subf %67, %68 : vector<1x32xf32>
    %70 = vector.broadcast %66 : vector<1x32xf32> to vector<32x32xf32>
    %71 = arith.mulf %48, %70 : vector<32x32xf32>
    %72 = vector.broadcast %69 : vector<1x32xf32> to vector<32x32xf32>
    %73 = arith.addf %71, %72 : vector<32x32xf32>
    %cst_33 = arith.constant 0.000000e+00 : f32
    %74 = vector.broadcast %cst_33 : f32 to vector<32x32xf32>
    %75 = arith.maximumf %73, %74 : vector<32x32xf32>
    %76 = vector.extract_strided_slice %75 {offsets = [0, 0], sizes = [8, 32], strides = [1, 1]} : vector<32x32xf32> to vector<8x32xf32>
    %77 = arith.truncf %76 : vector<8x32xf32> to vector<8x32xbf16>
    %c0_34 = arith.constant 0 : index
    %c0_35 = arith.constant 0 : index
    %78 = vector.load %arg7[%c0_34, %c0_35] : memref<128x64xbf16, #tpu.memory_space<vmem>>, vector<32x64xbf16>
    %cst_36 = arith.constant dense<0.000000e+00> : vector<8x64xf32>
    %79 = tpu.matmul %77, %78, %cst_36 {dimension_numbers = #tpu.dot_dimension_numbers<[1], [0], [0], [1], [0, 0, 1, 1], [], []>} : vector<8x32xbf16>, vector<32x64xbf16>, vector<8x64xf32> -> vector<8x64xf32>
    %80 = vector.extract_strided_slice %75 {offsets = [8, 0], sizes = [8, 32], strides = [1, 1]} : vector<32x32xf32> to vector<8x32xf32>
    %81 = arith.truncf %80 : vector<8x32xf32> to vector<8x32xbf16>
    %c32_37 = arith.constant 32 : index
    %c0_38 = arith.constant 0 : index
    %82 = vector.load %arg7[%c32_37, %c0_38] : memref<128x64xbf16, #tpu.memory_space<vmem>>, vector<32x64xbf16>
    %cst_39 = arith.constant dense<0.000000e+00> : vector<8x64xf32>
    %83 = tpu.matmul %81, %82, %cst_39 {dimension_numbers = #tpu.dot_dimension_numbers<[1], [0], [0], [1], [0, 0, 1, 1], [], []>} : vector<8x32xbf16>, vector<32x64xbf16>, vector<8x64xf32> -> vector<8x64xf32>
    %84 = arith.addf %79, %83 : vector<8x64xf32>
    %85 = vector.extract_strided_slice %75 {offsets = [16, 0], sizes = [8, 32], strides = [1, 1]} : vector<32x32xf32> to vector<8x32xf32>
    %86 = arith.truncf %85 : vector<8x32xf32> to vector<8x32xbf16>
    %c64 = arith.constant 64 : index
    %c0_40 = arith.constant 0 : index
    %87 = vector.load %arg7[%c64, %c0_40] : memref<128x64xbf16, #tpu.memory_space<vmem>>, vector<32x64xbf16>
    %cst_41 = arith.constant dense<0.000000e+00> : vector<8x64xf32>
    %88 = tpu.matmul %86, %87, %cst_41 {dimension_numbers = #tpu.dot_dimension_numbers<[1], [0], [0], [1], [0, 0, 1, 1], [], []>} : vector<8x32xbf16>, vector<32x64xbf16>, vector<8x64xf32> -> vector<8x64xf32>
    %89 = arith.addf %84, %88 : vector<8x64xf32>
    %90 = vector.extract_strided_slice %75 {offsets = [24, 0], sizes = [8, 32], strides = [1, 1]} : vector<32x32xf32> to vector<8x32xf32>
    %91 = arith.truncf %90 : vector<8x32xf32> to vector<8x32xbf16>
    %c96 = arith.constant 96 : index
    %c0_42 = arith.constant 0 : index
    %92 = vector.load %arg7[%c96, %c0_42] : memref<128x64xbf16, #tpu.memory_space<vmem>>, vector<32x64xbf16>
    %cst_43 = arith.constant dense<0.000000e+00> : vector<8x64xf32>
    %93 = tpu.matmul %91, %92, %cst_43 {dimension_numbers = #tpu.dot_dimension_numbers<[1], [0], [0], [1], [0, 0, 1, 1], [], []>} : vector<8x32xbf16>, vector<32x64xbf16>, vector<8x64xf32> -> vector<8x64xf32>
    %94 = arith.addf %89, %93 : vector<8x64xf32>
    %cst_44 = arith.constant dense<0.000000e+00> : vector<64xf32>
    %95 = vector.multi_reduction <add>, %94, %cst_44 [0] : vector<8x64xf32> to vector<64xf32>
    %96 = vector.shape_cast %95 : vector<64xf32> to vector<1x64xf32>
    %cst_45 = arith.constant 1.250000e-01 : f32
    %97 = vector.broadcast %cst_45 : f32 to vector<1x64xf32>
    %98 = arith.mulf %96, %97 : vector<1x64xf32>
    %99 = arith.mulf %94, %94 : vector<8x64xf32>
    %cst_46 = arith.constant dense<0.000000e+00> : vector<64xf32>
    %100 = vector.multi_reduction <add>, %99, %cst_46 [0] : vector<8x64xf32> to vector<64xf32>
    %101 = vector.shape_cast %100 : vector<64xf32> to vector<1x64xf32>
    %cst_47 = arith.constant 1.250000e-01 : f32
    %102 = vector.broadcast %cst_47 : f32 to vector<1x64xf32>
    %103 = arith.mulf %101, %102 : vector<1x64xf32>
    %104 = arith.mulf %98, %98 : vector<1x64xf32>
    %105 = arith.subf %103, %104 : vector<1x64xf32>
    %cst_48 = arith.constant 0.000000e+00 : f32
    %106 = vector.broadcast %cst_48 : f32 to vector<1x64xf32>
    %107 = arith.maximumf %105, %106 : vector<1x64xf32>
    %c0_49 = arith.constant 0 : index
    %c0_50 = arith.constant 0 : index
    %108 = vector.load %arg8[%c0_49, %c0_50] : memref<1x64xf32, #tpu.memory_space<vmem>>, vector<1x64xf32>
    %cst_51 = arith.constant 9.99999974E-6 : f32
    %109 = vector.broadcast %cst_51 : f32 to vector<1x64xf32>
    %110 = arith.addf %107, %109 : vector<1x64xf32>
    %111 = math.rsqrt %110 : vector<1x64xf32>
    %112 = arith.mulf %108, %111 : vector<1x64xf32>
    %c0_52 = arith.constant 0 : index
    %c0_53 = arith.constant 0 : index
    %113 = vector.load %arg9[%c0_52, %c0_53] : memref<1x64xf32, #tpu.memory_space<vmem>>, vector<1x64xf32>
    %114 = arith.mulf %98, %112 : vector<1x64xf32>
    %115 = arith.subf %113, %114 : vector<1x64xf32>
    %116 = vector.broadcast %112 : vector<1x64xf32> to vector<8x64xf32>
    %117 = arith.mulf %94, %116 : vector<8x64xf32>
    %118 = vector.broadcast %115 : vector<1x64xf32> to vector<8x64xf32>
    %119 = arith.addf %117, %118 : vector<8x64xf32>
    %cst_54 = arith.constant 0.000000e+00 : f32
    %120 = vector.broadcast %cst_54 : f32 to vector<8x64xf32>
    %121 = arith.maximumf %119, %120 : vector<8x64xf32>
    %c0_55 = arith.constant 0 : index
    %c0_56 = arith.constant 0 : index
    %122 = vector.load %arg10[%c0_55, %c0_56] : memref<8x64xf32, #tpu.memory_space<vmem>>, vector<8x64xf32>
    %123 = arith.mulf %121, %122 : vector<8x64xf32>
    %124 = arith.truncf %123 : vector<8x64xf32> to vector<8x64xbf16>
    %c0_57 = arith.constant 0 : index
    %c0_58 = arith.constant 0 : index
    %125 = vector.load %arg12[%c0_57, %c0_58] : memref<8x8xbf16, #tpu.memory_space<vmem>>, vector<8x8xbf16>
    %cst_59 = arith.constant dense<0.000000e+00> : vector<8x64xf32>
    %126 = tpu.matmul %125, %124, %cst_59 {dimension_numbers = #tpu.dot_dimension_numbers<[1], [0], [0], [1], [0, 0, 1, 1], [], []>} : vector<8x8xbf16>, vector<8x64xbf16>, vector<8x64xf32> -> vector<8x64xf32>
    %cst_60 = arith.constant dense<0.000000e+00> : vector<8xf32>
    %127 = vector.multi_reduction <add>, %126, %cst_60 [1] : vector<8x64xf32> to vector<8xf32>
    %128 = vector.shape_cast %127 : vector<8xf32> to vector<8x1xf32>
    %c0_61 = arith.constant 0 : index
    %c0_62 = arith.constant 0 : index
    %129 = vector.load %arg11[%c0_61, %c0_62] : memref<1x1xf32, #tpu.memory_space<vmem>>, vector<1x1xf32>
    %130 = vector.broadcast %129 : vector<1x1xf32> to vector<8x1xf32>
    %131 = arith.addf %128, %130 : vector<8x1xf32>
    %132 = arith.negf %131 : vector<8x1xf32>
    %133 = math.exp %132 : vector<8x1xf32>
    %cst_63 = arith.constant 1.000000e+00 : f32
    %134 = vector.broadcast %cst_63 : f32 to vector<8x1xf32>
    %135 = arith.addf %134, %133 : vector<8x1xf32>
    %136 = arith.divf %134, %135 : vector<8x1xf32>
    %c0_64 = arith.constant 0 : index
    %c0_65 = arith.constant 0 : index
    %137 = vector.load %arg13[%c0_64, %c0_65] : memref<8x128xf32, #tpu.memory_space<vmem>>, vector<8x64xf32>
    tpu.vector_store %arg13[%c0_64, %c0_65], %121 {strides = array<i32>} : memref<8x128xf32, #tpu.memory_space<vmem>>, vector<8x64xf32>,
    %138 = vector.shape_cast %136 : vector<8x1xf32> to vector<8x1xf32>
    %139 = vector.broadcast %138 : vector<8x1xf32> to vector<8x64xf32>
    %c0_66 = arith.constant 0 : index
    %c64_67 = arith.constant 64 : index
    %140 = vector.load %arg13[%c0_66, %c64_67] : memref<8x128xf32, #tpu.memory_space<vmem>>, vector<8x64xf32>
    tpu.vector_store %arg13[%c0_66, %c64_67], %139 {strides = array<i32>} : memref<8x128xf32, #tpu.memory_space<vmem>>, vector<8x64xf32>,
    return
  }
}

</mosaic_0001>

<llo_original>
// kernel: vae_gan_discriminator_forward.1
$region0: #{vae_gan_discriminator_forward.1}
  #allocation0 [shape = 'u32[]', space=smem, size = 0x4, offset = 0x4, fixed_abs, tag = 'smem constant byte address 0x4 - core index']
  #allocation1 [shape = 'u32[144,128]{1,0:T(1,128)}', space=vmem, size = 0x12000, scoped, tag = 'internal scratch']
  #allocation2 [shape = 'f32[1,1]{1,0:T(1,128)S(1)}', space=vmem, size = 0x200, scoped, tag = 'scoped memory for vae_gan_discriminator_forward.1']
  %s0 = inlined_call_operand.vmem [shape: bf16[128,12], index: 0, kind: input, shape index: {}]
  %s1 = inlined_call_operand.vmem [shape: bf16[12,16], index: 1, kind: input, shape index: {}]
  %s2 = inlined_call_operand.vmem [shape: f32[1,16], index: 2, kind: input, shape index: {}]
  %s3 = inlined_call_operand.vmem [shape: f32[1,16], index: 3, kind: input, shape index: {}]
  %s4 = inlined_call_operand.vmem [shape: bf16[64,32], index: 4, kind: input, shape index: {}]
  %s5 = inlined_call_operand.vmem [shape: f32[1,32], index: 5, kind: input, shape index: {}]
  %s6 = inlined_call_operand.vmem [shape: f32[1,32], index: 6, kind: input, shape index: {}]
  %s7 = inlined_call_operand.vmem [shape: bf16[128,64], index: 7, kind: input, shape index: {}]
  %s8 = inlined_call_operand.vmem [shape: f32[1,64], index: 8, kind: input, shape index: {}]
  %s9 = inlined_call_operand.vmem [shape: f32[1,64], index: 9, kind: input, shape index: {}]
  %s10 = inlined_call_operand.vmem [shape: f32[8,64], index: 10, kind: input, shape index: {}]
  %s11 = inlined_call_operand.<no memory space> [shape: f32[1,1], index: 11, kind: input, shape index: {}]
  %s12 = inlined_call_operand.vmem [shape: bf16[8,8], index: 12, kind: input, shape index: {}]
  %s13 = inlined_call_operand.vmem [shape: f32[8,128], index: 13, kind: output, shape index: {}]
  %s14 = sld [smem:[#allocation0]]
  $region62: #{vae_gan_discriminator_forward.1} parent=0
    _
  %s16 = ssub.s32 1, %s14
  %s17 = scalar_select 0, %s16, %s14
  %v18 = vstv %s11
  %19 = vst [vmem:[#allocation2] sm:$0x1] %v18
  // Predicated region
  $region2: #{vae_gan_discriminator_forward.1} parent=0 // pred_check
    _
  $region3: #{vae_gan_discriminator_forward.1} parent=0 // pred_check_branch
    %21 = sbr.rel (0) target = $region5
  $region4: #{vae_gan_discriminator_forward.1} parent=0 // pred_region
    _
  $region5: #{vae_gan_discriminator_forward.1} parent=0 // pred_fallthru
    _
  // Predicated region
  $region6: #{vae_gan_discriminator_forward.1} parent=0 // pred_check
    _
  $region7: #{vae_gan_discriminator_forward.1} parent=0 // pred_check_branch
    %23 = sbr.rel (0) target = $region9
  $region8: #{vae_gan_discriminator_forward.1} parent=0 // pred_region
    _
  $region9: #{vae_gan_discriminator_forward.1} parent=0 // pred_fallthru
    _
  // Predicated region
  $region10: #{vae_gan_discriminator_forward.1} parent=0 // pred_check
    _
  $region11: #{vae_gan_discriminator_forward.1} parent=0 // pred_check_branch
    %25 = sbr.rel (0) target = $region13
  $region12: #{vae_gan_discriminator_forward.1} parent=0 // pred_region
    _
  $region13: #{vae_gan_discriminator_forward.1} parent=0 // pred_fallthru
    _
  // Predicated region
  $region14: #{vae_gan_discriminator_forward.1} parent=0 // pred_check
    _
  $region15: #{vae_gan_discriminator_forward.1} parent=0 // pred_check_branch
    %27 = sbr.rel (0) target = $region17
  $region16: #{vae_gan_discriminator_forward.1} parent=0 // pred_region
    _
  $region17: #{vae_gan_discriminator_forward.1} parent=0 // pred_fallthru
    _
  // Predicated region
  $region18: #{vae_gan_discriminator_forward.1} parent=0 // pred_check
    _
  $region19: #{vae_gan_discriminator_forward.1} parent=0 // pred_check_branch
    %29 = sbr.rel (0) target = $region21
  $region20: #{vae_gan_discriminator_forward.1} parent=0 // pred_region
    _
  $region21: #{vae_gan_discriminator_forward.1} parent=0 // pred_fallthru
    _
  // Predicated region
  $region22: #{vae_gan_discriminator_forward.1} parent=0 // pred_check
    _
  $region23: #{vae_gan_discriminator_forward.1} parent=0 // pred_check_branch
    %31 = sbr.rel (0) target = $region25
  $region24: #{vae_gan_discriminator_forward.1} parent=0 // pred_region
    _
  $region25: #{vae_gan_discriminator_forward.1} parent=0 // pred_fallthru
    _
  // Predicated region
  $region26: #{vae_gan_discriminator_forward.1} parent=0 // pred_check
    _
  $region27: #{vae_gan_discriminator_forward.1} parent=0 // pred_check_branch
    %33 = sbr.rel (0) target = $region29
  $region28: #{vae_gan_discriminator_forward.1} parent=0 // pred_region
    _
  $region29: #{vae_gan_discriminator_forward.1} parent=0 // pred_fallthru
    _
  // Predicated region
  $region30: #{vae_gan_discriminator_forward.1} parent=0 // pred_check
    _
  $region31: #{vae_gan_discriminator_forward.1} parent=0 // pred_check_branch
    %35 = sbr.rel (0) target = $region33
  $region32: #{vae_gan_discriminator_forward.1} parent=0 // pred_region
    _
  $region33: #{vae_gan_discriminator_forward.1} parent=0 // pred_fallthru
    _
  // Predicated region
  $region34: #{vae_gan_discriminator_forward.1} parent=0 // pred_check
    _
  $region35: #{vae_gan_discriminator_forward.1} parent=0 // pred_check_branch
    %37 = sbr.rel (0) target = $region37
  $region36: #{vae_gan_discriminator_forward.1} parent=0 // pred_region
    _
  $region37: #{vae_gan_discriminator_forward.1} parent=0 // pred_fallthru
    _
  // Predicated region
  $region38: #{vae_gan_discriminator_forward.1} parent=0 // pred_check
    _
  $region39: #{vae_gan_discriminator_forward.1} parent=0 // pred_check_branch
    %39 = sbr.rel (0) target = $region41
  $region40: #{vae_gan_discriminator_forward.1} parent=0 // pred_region
    _
  $region41: #{vae_gan_discriminator_forward.1} parent=0 // pred_fallthru
    _
  // Predicated region
  $region42: #{vae_gan_discriminator_forward.1} parent=0 // pred_check
    _
  $region43: #{vae_gan_discriminator_forward.1} parent=0 // pred_check_branch
    %41 = sbr.rel (0) target = $region45
  $region44: #{vae_gan_discriminator_forward.1} parent=0 // pred_region
    _
  $region45: #{vae_gan_discriminator_forward.1} parent=0 // pred_fallthru
    _
  // Predicated region
  $region46: #{vae_gan_discriminator_forward.1} parent=0 // pred_check
    _
  $region47: #{vae_gan_discriminator_forward.1} parent=0 // pred_check_branch
    %43 = sbr.rel (0) target = $region49
  $region48: #{vae_gan_discriminator_forward.1} parent=0 // pred_region
    _
  $region49: #{vae_gan_discriminator_forward.1} parent=0 // pred_fallthru
    _
  // Predicated region
  $region50: #{vae_gan_discriminator_forward.1} parent=0 // pred_check
    _
  $region51: #{vae_gan_discriminator_forward.1} parent=0 // pred_check_branch
    %45 = sbr.rel (0) target = $region53
  $region52: #{vae_gan_discriminator_forward.1} parent=0 // pred_region
    _
  $region53: #{vae_gan_discriminator_forward.1} parent=0 // pred_fallthru
    _
  %v47 = vld [vmem:[%s0] sm:$0xf]
  %v48 = vld [vmem:[%s0 + $0x4] sm:$0xf]
  %v49 = vld [vmem:[%s0 + $0x8] sm:$0xf]
  %v50 = vld [vmem:[%s0 + $0xc] sm:$0xf]
  %v51 = vld [vmem:[%s0 + $0x10] sm:$0xf]
  %v52 = vld [vmem:[%s0 + $0x14] sm:$0xf]
  %v53 = vld [vmem:[%s0 + $0x18] sm:$0xf]
  %v54 = vld [vmem:[%s0 + $0x1c] sm:$0xf]
  %v55 = vld [vmem:[%s0 + $0x20] sm:$0xf]
  %v56 = vld [vmem:[%s0 + $0x24] sm:$0xf]
  %v57 = vld [vmem:[%s0 + $0x28] sm:$0xf]
  %v58 = vld [vmem:[%s0 + $0x2c] sm:$0xf]
  %v59 = vld [vmem:[%s0 + $0x30] sm:$0xf]
  %v60 = vld [vmem:[%s0 + $0x34] sm:$0xf]
  %v61 = vld [vmem:[%s0 + $0x38] sm:$0xf]
  %v62 = vld [vmem:[%s0 + $0x3c] sm:$0xf]
  %v63 = vld [vmem:[%s1] sm:$0xf]
  %v64 = vld [vmem:[%s1 + $0x4] sm:$0x3]
  %v81 = vunpack.c.l.b16 %v47
  %v82 = vunpack.c.l.b16 %v48
  %v83 = vunpack.c.l.b16 %v49
  %v84 = vunpack.c.l.b16 %v50
  %v85 = vunpack.c.l.b16 %v51
  %v86 = vunpack.c.l.b16 %v52
  %v87 = vunpack.c.l.b16 %v53
  %v88 = vunpack.c.l.b16 %v54
  %v89 = vunpack.c.l.b16 %v55
  %v90 = vunpack.c.l.b16 %v56
  %v91 = vunpack.c.l.b16 %v57
  %v92 = vunpack.c.l.b16 %v58
  %v93 = vunpack.c.l.b16 %v59
  %v94 = vunpack.c.l.b16 %v60
  %v95 = vunpack.c.l.b16 %v61
  %v96 = vunpack.c.l.b16 %v62
  %v97 = vpack.c.b16 %v82, %v81
  %v98 = vpack.c.b16 %v84, %v83
  %v99 = vpack.c.b16 %v86, %v85
  %v100 = vpack.c.b16 %v88, %v87
  %v101 = vpack.c.b16 %v90, %v89
  %v102 = vpack.c.b16 %v92, %v91
  %v103 = vpack.c.b16 %v94, %v93
  %v104 = vpack.c.b16 %v96, %v95
  %v107 = vunpack.c.l.b16 %v63
  %v108 = vunpack.c.l.b16 %v64
  %v109 = vpack.c.b16 %v108, %v107
  %vm110 = vcmask 97280
  %v112 = vsel %vm110, %v97, 0
  %v115 = vsel %vm110, %v98, 0
  %v118 = vsel %vm110, %v99, 0
  %v121 = vsel %vm110, %v100, 0
  %v124 = vsel %vm110, %v101, 0
  %v127 = vsel %vm110, %v102, 0
  %v130 = vsel %vm110, %v103, 0
  %v133 = vsel %vm110, %v104, 0
  %vm135 = vcmask 1045504
  %v137 = vsel %vm135, %v109, 0
  %139 = vmatprep.subr.bf16.mxu0 0
  %140 = vmatpush1.bf16.msra.mxu0 %v137
  %141 = vmatprep.subr.bf16.mxu0 0
  %142 = vmatpush1.bf16.msra.mxu0 0
  %143 = vmatprep.subr.bf16.mxu0 0
  %144 = vmatpush1.bf16.msra.mxu0 0
  %145 = vmatprep.subr.bf16.mxu0 0
  %146 = vmatpush1.bf16.msra.mxu0 0
  %147 = vmatprep.subr.bf16.mxu0 0
  %148 = vmatpush1.bf16.msra.mxu0 0
  %149 = vmatprep.subr.bf16.mxu0 0
  %150 = vmatpush1.bf16.msra.mxu0 0
  %151 = vmatprep.subr.bf16.mxu0 0
  %152 = vmatpush1.bf16.msra.mxu0 0
  %153 = vmatprep.subr.bf16.mxu0 0
  %154 = vmatpush1.bf16.msra.mxu0 0
  %155 = vmatprep.subr.bf16.mxu0 0
  %156 = vmatpush1.bf16.msra.mxu0 0
  %157 = vmatprep.subr.bf16.mxu0 0
  %158 = vmatpush1.bf16.msra.mxu0 0
  %159 = vmatprep.subr.bf16.mxu0 0
  %160 = vmatpush1.bf16.msra.mxu0 0
  %161 = vmatprep.subr.bf16.mxu0 0
  %162 = vmatpush1.bf16.msra.mxu0 0
  %163 = vmatprep.subr.bf16.mxu0 0
  %164 = vmatpush1.bf16.msra.mxu0 0
  %165 = vmatprep.subr.bf16.mxu0 0
  %166 = vmatpush1.bf16.msra.mxu0 0
  %167 = vmatprep.subr.bf16.mxu0 0
  %168 = vmatpush1.bf16.msra.mxu0 0
  %169 = vmatprep.subr.bf16.mxu0 0
  %170 = vmatpush1.bf16.msra.mxu0 0
  %171 = vmatprep.mubr.bf16.mxu0 0
  %172 = vmatmul.mubr.bf16.gmra.mrb[0].mxu0 %v112
  %v173 = vpop.f32.mrb[0].mxu0
  %v174 = vadd.f32 0.0, %v173
  %v175 = vpop.f32.mrb[0].mxu0
  %v176 = vpop.f32.mrb[0].mxu0
  %v177 = vadd.f32 0.0, %v176
  %v178 = vpop.f32.mrb[0].mxu0
  %179 = vmatprep.mubr.bf16.mxu0 0
  %180 = vmatmul.mubr.bf16.gmra.mrb[0].mxu0 %v115
  %v181 = vpop.f32.mrb[0].mxu0
  %v182 = vadd.f32 0.0, %v181
  %v183 = vpop.f32.mrb[0].mxu0
  %v184 = vpop.f32.mrb[0].mxu0
  %v185 = vadd.f32 0.0, %v184
  %v186 = vpop.f32.mrb[0].mxu0
  %187 = vmatprep.mubr.bf16.mxu0 0
  %188 = vmatmul.mubr.bf16.gmra.mrb[0].mxu0 %v118
  %v189 = vpop.f32.mrb[0].mxu0
  %v190 = vadd.f32 0.0, %v189
  %v191 = vpop.f32.mrb[0].mxu0
  %v192 = vpop.f32.mrb[0].mxu0
  %v193 = vadd.f32 0.0, %v192
  %v194 = vpop.f32.mrb[0].mxu0
  %195 = vmatprep.mubr.bf16.mxu0 0
  %196 = vmatmul.mubr.bf16.gmra.mrb[0].mxu0 %v121
  %v197 = vpop.f32.mrb[0].mxu0
  %v198 = vadd.f32 0.0, %v197
  %v199 = vpop.f32.mrb[0].mxu0
  %v200 = vpop.f32.mrb[0].mxu0
  %v201 = vadd.f32 0.0, %v200
  %v202 = vpop.f32.mrb[0].mxu0
  %203 = vmatprep.mubr.bf16.mxu0 0
  %204 = vmatmul.mubr.bf16.gmra.mrb[0].mxu0 %v124
  %v205 = vpop.f32.mrb[0].mxu0
  %v206 = vadd.f32 0.0, %v205
  %v207 = vpop.f32.mrb[0].mxu0
  %v208 = vpop.f32.mrb[0].mxu0
  %v209 = vadd.f32 0.0, %v208
  %v210 = vpop.f32.mrb[0].mxu0
  %211 = vmatprep.mubr.bf16.mxu0 0
  %212 = vmatmul.mubr.bf16.gmra.mrb[0].mxu0 %v127
  %v213 = vpop.f32.mrb[0].mxu0
  %v214 = vadd.f32 0.0, %v213
  %v215 = vpop.f32.mrb[0].mxu0
  %v216 = vpop.f32.mrb[0].mxu0
  %v217 = vadd.f32 0.0, %v216
  %v218 = vpop.f32.mrb[0].mxu0
  %219 = vmatprep.mubr.bf16.mxu0 0
  %220 = vmatmul.mubr.bf16.gmra.mrb[0].mxu0 %v130
  %v221 = vpop.f32.mrb[0].mxu0
  %v222 = vadd.f32 0.0, %v221
  %v223 = vpop.f32.mrb[0].mxu0
  %v224 = vpop.f32.mrb[0].mxu0
  %v225 = vadd.f32 0.0, %v224
  %v226 = vpop.f32.mrb[0].mxu0
  %227 = vmatprep.mubr.bf16.mxu0 0
  %228 = vmatmul.mubr.bf16.gmra.mrb[0].mxu0 %v133
  %v229 = vpop.f32.mrb[0].mxu0
  %v230 = vadd.f32 0.0, %v229
  %v231 = vpop.f32.mrb[0].mxu0
  %v232 = vpop.f32.mrb[0].mxu0
  %v233 = vadd.f32 0.0, %v232
  %v234 = vpop.f32.mrb[0].mxu0
  %235 = vdwg.mxu0
  %vm236 = vcmask 130048
  %v237 = vsel %vm236, %v174, 0.0
  %v238 = vsel %vm236, %v177, 0.0
  %v239 = vadd.f32 %v237, %v238
  %v240 = vsel %vm236, %v182, 0.0
  %v241 = vadd.f32 %v239, %v240
  %v242 = vsel %vm236, %v185, 0.0
  %v243 = vadd.f32 %v241, %v242
  %v244 = vsel %vm236, %v190, 0.0
  %v245 = vadd.f32 %v243, %v244
  %v246 = vsel %vm236, %v193, 0.0
  %v247 = vadd.f32 %v245, %v246
  %v248 = vsel %vm236, %v198, 0.0
  %v249 = vadd.f32 %v247, %v248
  %v250 = vsel %vm236, %v201, 0.0
  %v251 = vadd.f32 %v249, %v250
  %v252 = vsel %vm236, %v206, 0.0
  %v253 = vadd.f32 %v251, %v252
  %v254 = vsel %vm236, %v209, 0.0
  %v255 = vadd.f32 %v253, %v254
  %v256 = vsel %vm236, %v214, 0.0
  %v257 = vadd.f32 %v255, %v256
  %v258 = vsel %vm236, %v217, 0.0
  %v259 = vadd.f32 %v257, %v258
  %v260 = vsel %vm236, %v222, 0.0
  %v261 = vadd.f32 %v259, %v260
  %v262 = vsel %vm236, %v225, 0.0
  %v263 = vadd.f32 %v261, %v262
  %v264 = vsel %vm236, %v230, 0.0
  %v265 = vadd.f32 %v263, %v264
  %v266 = vsel %vm236, %v233, 0.0
  %v267 = vadd.f32 %v265, %v266
  %v268 = vrot.slane %v267, 4
  %v269 = vadd.f32 %v267, %v268
  %v270 = vrot.slane %v269, 2
  %v271 = vadd.f32 %v269, %v270
  %v272 = vrot.slane %v271, 1
  %v273 = vadd.f32 %v271, %v272
  %v274 = vmul.f32 %v273, 0.0078125
  %v275 = vmul.f32 %v174, %v174
  %v276 = vmul.f32 %v177, %v177
  %v277 = vmul.f32 %v182, %v182
  %v278 = vmul.f32 %v185, %v185
  %v279 = vmul.f32 %v190, %v190
  %v280 = vmul.f32 %v193, %v193
  %v281 = vmul.f32 %v198, %v198
  %v282 = vmul.f32 %v201, %v201
  %v283 = vmul.f32 %v206, %v206
  %v284 = vmul.f32 %v209, %v209
  %v285 = vmul.f32 %v214, %v214
  %v286 = vmul.f32 %v217, %v217
  %v287 = vmul.f32 %v222, %v222
  %v288 = vmul.f32 %v225, %v225
  %v289 = vmul.f32 %v230, %v230
  %v290 = vmul.f32 %v233, %v233
  %v291 = vsel %vm236, %v275, 0.0
  %v292 = vsel %vm236, %v276, 0.0
  %v293 = vadd.f32 %v291, %v292
  %v294 = vsel %vm236, %v277, 0.0
  %v295 = vadd.f32 %v293, %v294
  %v296 = vsel %vm236, %v278, 0.0
  %v297 = vadd.f32 %v295, %v296
  %v298 = vsel %vm236, %v279, 0.0
  %v299 = vadd.f32 %v297, %v298
  %v300 = vsel %vm236, %v280, 0.0
  %v301 = vadd.f32 %v299, %v300
  %v302 = vsel %vm236, %v281, 0.0
  %v303 = vadd.f32 %v301, %v302
  %v304 = vsel %vm236, %v282, 0.0
  %v305 = vadd.f32 %v303, %v304
  %v306 = vsel %vm236, %v283, 0.0
  %v307 = vadd.f32 %v305, %v306
  %v308 = vsel %vm236, %v284, 0.0
  %v309 = vadd.f32 %v307, %v308
  %v310 = vsel %vm236, %v285, 0.0
  %v311 = vadd.f32 %v309, %v310
  %v312 = vsel %vm236, %v286, 0.0
  %v313 = vadd.f32 %v311, %v312
  %v314 = vsel %vm236, %v287, 0.0
  %v315 = vadd.f32 %v313, %v314
  %v316 = vsel %vm236, %v288, 0.0
  %v317 = vadd.f32 %v315, %v316
  %v318 = vsel %vm236, %v289, 0.0
  %v319 = vadd.f32 %v317, %v318
  %v320 = vsel %vm236, %v290, 0.0
  %v321 = vadd.f32 %v319, %v320
  %v322 = vrot.slane %v321, 4
  %v323 = vadd.f32 %v321, %v322
  %v324 = vrot.slane %v323, 2
  %v325 = vadd.f32 %v323, %v324
  %v326 = vrot.slane %v325, 1
  %v327 = vadd.f32 %v325, %v326
  %v328 = vmul.f32 %v327, 0.0078125
  %v329 = vmul.f32 %v274, %v274
  %v330 = vsub.f32 %v328, %v329
  %v331 = vmax.f32 %v330, 0.0
  %v332 = vld [vmem:[%s2] sm:$0x1]
  %v333 = vadd.f32 %v331, 1e-05
  %v334 = vrsqrt.pop %v333
  %v335 = vmul.f32 %v332, %v334
  %v336 = vld [vmem:[%s3] sm:$0x1]
  %v337 = vmul.f32 %v274, %v335
  %v338 = vsub.f32 %v336, %v337
  %v340 = vlaneseq
  %v341 = vshrl.u32 %v340, 7
  %v342 = vsub.s32 0, %v341
  %v343 = vrot.slane %v335, %v342
  %v345 = vmul.f32 %v174, %v343
  %v346 = vmul.f32 %v177, %v343
  %v347 = vmul.f32 %v182, %v343
  %v348 = vmul.f32 %v185, %v343
  %v349 = vmul.f32 %v190, %v343
  %v350 = vmul.f32 %v193, %v343
  %v351 = vmul.f32 %v198, %v343
  %v352 = vmul.f32 %v201, %v343
  %v353 = vmul.f32 %v206, %v343
  %v354 = vmul.f32 %v209, %v343
  %v355 = vmul.f32 %v214, %v343
  %v356 = vmul.f32 %v217, %v343
  %v357 = vmul.f32 %v222, %v343
  %v358 = vmul.f32 %v225, %v343
  %v359 = vmul.f32 %v230, %v343
  %v360 = vmul.f32 %v233, %v343
  %v362 = vlaneseq
  %v363 = vshrl.u32 %v362, 7
  %v364 = vsub.s32 0, %v363
  %v365 = vrot.slane %v338, %v364
  %v367 = vadd.f32 %v345, %v365
  %v368 = vadd.f32 %v346, %v365
  %v369 = vadd.f32 %v347, %v365
  %v370 = vadd.f32 %v348, %v365
  %v371 = vadd.f32 %v349, %v365
  %v372 = vadd.f32 %v350, %v365
  %v373 = vadd.f32 %v351, %v365
  %v374 = vadd.f32 %v352, %v365
  %v375 = vadd.f32 %v353, %v365
  %v376 = vadd.f32 %v354, %v365
  %v377 = vadd.f32 %v355, %v365
  %v378 = vadd.f32 %v356, %v365
  %v379 = vadd.f32 %v357, %v365
  %v380 = vadd.f32 %v358, %v365
  %v381 = vadd.f32 %v359, %v365
  %v382 = vadd.f32 %v360, %v365
  %v383 = vmax.f32 %v367, 0.0
  %v384 = vmax.f32 %v368, 0.0
  %v385 = vmax.f32 %v369, 0.0
  %v386 = vmax.f32 %v370, 0.0
  %v387 = vmax.f32 %v371, 0.0
  %v388 = vmax.f32 %v372, 0.0
  %v389 = vmax.f32 %v373, 0.0
  %v390 = vmax.f32 %v374, 0.0
  %v391 = vmax.f32 %v375, 0.0
  %v392 = vmax.f32 %v376, 0.0
  %v393 = vmax.f32 %v377, 0.0
  %v394 = vmax.f32 %v378, 0.0
  %v395 = vmax.f32 %v379, 0.0
  %v396 = vmax.f32 %v380, 0.0
  %v397 = vmax.f32 %v381, 0.0
  %v398 = vmax.f32 %v382, 0.0
  %v399 = vpack.c.bf16 %v384, %v383
  %v400 = vpack.c.bf16 %v386, %v385
  %v401 = vld [vmem:[%s4] sm:$0xf]
  %v402 = vld [vmem:[%s4 + $0x4] sm:$0xf]
  %v403 = vpack.c.bf16 %v388, %v387
  %v404 = vpack.c.bf16 %v390, %v389
  %v405 = vld [vmem:[%s4 + $0x8] sm:$0xf]
  %v406 = vld [vmem:[%s4 + $0xc] sm:$0xf]
  %v409 = vunpack.c.l.b16 %v405
  %v410 = vunpack.c.l.b16 %v406
  %v411 = vpack.c.b16 %v410, %v409
  %v414 = vsel %vm236, %v403, 0
  %v417 = vsel %vm236, %v404, 0
  %419 = vmatprep.subr.bf16.mxu0 0
  %420 = vmatpush1.bf16.msra.mxu0 %v411
  %421 = vmatprep.subr.bf16.mxu0 0
  %422 = vmatpush1.bf16.msra.mxu0 0
  %423 = vmatprep.subr.bf16.mxu0 0
  %424 = vmatpush1.bf16.msra.mxu0 0
  %425 = vmatprep.subr.bf16.mxu0 0
  %426 = vmatpush1.bf16.msra.mxu0 0
  %427 = vmatprep.subr.bf16.mxu0 0
  %428 = vmatpush1.bf16.msra.mxu0 0
  %429 = vmatprep.subr.bf16.mxu0 0
  %430 = vmatpush1.bf16.msra.mxu0 0
  %431 = vmatprep.subr.bf16.mxu0 0
  %432 = vmatpush1.bf16.msra.mxu0 0
  %433 = vmatprep.subr.bf16.mxu0 0
  %434 = vmatpush1.bf16.msra.mxu0 0
  %435 = vmatprep.subr.bf16.mxu0 0
  %436 = vmatpush1.bf16.msra.mxu0 0
  %437 = vmatprep.subr.bf16.mxu0 0
  %438 = vmatpush1.bf16.msra.mxu0 0
  %439 = vmatprep.subr.bf16.mxu0 0
  %440 = vmatpush1.bf16.msra.mxu0 0
  %441 = vmatprep.subr.bf16.mxu0 0
  %442 = vmatpush1.bf16.msra.mxu0 0
  %443 = vmatprep.subr.bf16.mxu0 0
  %444 = vmatpush1.bf16.msra.mxu0 0
  %445 = vmatprep.subr.bf16.mxu0 0
  %446 = vmatpush1.bf16.msra.mxu0 0
  %447 = vmatprep.subr.bf16.mxu0 0
  %448 = vmatpush1.bf16.msra.mxu0 0
  %449 = vmatprep.subr.bf16.mxu0 0
  %450 = vmatpush1.bf16.msra.mxu0 0
  %451 = vmatprep.mubr.bf16.mxu0 0
  %452 = vmatmul.mubr.bf16.gmra.mrb[0].mxu0 %v414
  %v453 = vpop.f32.mrb[0].mxu0
  %v454 = vadd.f32 0.0, %v453
  %v455 = vpop.f32.mrb[0].mxu0
  %v456 = vpop.f32.mrb[0].mxu0
  %v457 = vadd.f32 0.0, %v456
  %v458 = vpop.f32.mrb[0].mxu0
  %459 = vmatprep.mubr.bf16.mxu0 0
  %460 = vmatmul.mubr.bf16.gmra.mrb[0].mxu0 %v417
  %v461 = vpop.f32.mrb[0].mxu0
  %v462 = vadd.f32 0.0, %v461
  %v463 = vpop.f32.mrb[0].mxu0
  %v464 = vpop.f32.mrb[0].mxu0
  %v465 = vadd.f32 0.0, %v464
  %v466 = vpop.f32.mrb[0].mxu0
  %467 = vdwg.mxu0
  %v470 = vunpack.c.l.b16 %v401
  %v471 = vunpack.c.l.b16 %v402
  %v472 = vpack.c.b16 %v471, %v470
  %v475 = vsel %vm236, %v399, 0
  %v478 = vsel %vm236, %v400, 0
  %480 = vmatprep.subr.bf16.mxu0 0
  %481 = vmatpush1.bf16.msra.mxu0 %v472
  %482 = vmatprep.subr.bf16.mxu0 0
  %483 = vmatpush1.bf16.msra.mxu0 0
  %484 = vmatprep.subr.bf16.mxu0 0
  %485 = vmatpush1.bf16.msra.mxu0 0
  %486 = vmatprep.subr.bf16.mxu0 0
  %487 = vmatpush1.bf16.msra.mxu0 0
  %488 = vmatprep.subr.bf16.mxu0 0
  %489 = vmatpush1.bf16.msra.mxu0 0
  %490 = vmatprep.subr.bf16.mxu0 0
  %491 = vmatpush1.bf16.msra.mxu0 0
  %492 = vmatprep.subr.bf16.mxu0 0
  %493 = vmatpush1.bf16.msra.mxu0 0
  %494 = vmatprep.subr.bf16.mxu0 0
  %495 = vmatpush1.bf16.msra.mxu0 0
  %496 = vmatprep.subr.bf16.mxu0 0
  %497 = vmatpush1.bf16.msra.mxu0 0
  %498 = vmatprep.subr.bf16.mxu0 0
  %499 = vmatpush1.bf16.msra.mxu0 0
  %500 = vmatprep.subr.bf16.mxu0 0
  %501 = vmatpush1.bf16.msra.mxu0 0
  %502 = vmatprep.subr.bf16.mxu0 0
  %503 = vmatpush1.bf16.msra.mxu0 0
  %504 = vmatprep.subr.bf16.mxu0 0
  %505 = vmatpush1.bf16.msra.mxu0 0
  %506 = vmatprep.subr.bf16.mxu0 0
  %507 = vmatpush1.bf16.msra.mxu0 0
  %508 = vmatprep.subr.bf16.mxu0 0
  %509 = vmatpush1.bf16.msra.mxu0 0
  %510 = vmatprep.subr.bf16.mxu0 0
  %511 = vmatpush1.bf16.msra.mxu0 0
  %512 = vmatprep.mubr.bf16.mxu0 0
  %513 = vmatmul.mubr.bf16.gmra.mrb[0].mxu0 %v475
  %v514 = vpop.f32.mrb[0].mxu0
  %v515 = vadd.f32 %v454, %v514
  %v516 = vpop.f32.mrb[0].mxu0
  %v517 = vpop.f32.mrb[0].mxu0
  %v518 = vadd.f32 %v457, %v517
  %v519 = vpop.f32.mrb[0].mxu0
  %520 = vmatprep.mubr.bf16.mxu0 0
  %521 = vmatmul.mubr.bf16.gmra.mrb[0].mxu0 %v478
  %v522 = vpop.f32.mrb[0].mxu0
  %v523 = vadd.f32 %v462, %v522
  %v524 = vpop.f32.mrb[0].mxu0
  %v525 = vpop.f32.mrb[0].mxu0
  %v526 = vadd.f32 %v465, %v525
  %v527 = vpop.f32.mrb[0].mxu0
  %528 = vdwg.mxu0
  %v529 = vpack.c.bf16 %v392, %v391
  %v530 = vpack.c.bf16 %v394, %v393
  %v531 = vld [vmem:[%s4 + $0x10] sm:$0xf]
  %v532 = vld [vmem:[%s4 + $0x14] sm:$0xf]
  %v535 = vunpack.c.l.b16 %v531
  %v536 = vunpack.c.l.b16 %v532
  %v537 = vpack.c.b16 %v536, %v535
  %v540 = vsel %vm236, %v529, 0
  %v543 = vsel %vm236, %v530, 0
  %545 = vmatprep.subr.bf16.mxu0 0
  %546 = vmatpush1.bf16.msra.mxu0 %v537
  %547 = vmatprep.subr.bf16.mxu0 0
  %548 = vmatpush1.bf16.msra.mxu0 0
  %549 = vmatprep.subr.bf16.mxu0 0
  %550 = vmatpush1.bf16.msra.mxu0 0
  %551 = vmatprep.subr.bf16.mxu0 0
  %552 = vmatpush1.bf16.msra.mxu0 0
  %553 = vmatprep.subr.bf16.mxu0 0
  %554 = vmatpush1.bf16.msra.mxu0 0
  %555 = vmatprep.subr.bf16.mxu0 0
  %556 = vmatpush1.bf16.msra.mxu0 0
  %557 = vmatprep.subr.bf16.mxu0 0
  %558 = vmatpush1.bf16.msra.mxu0 0
  %559 = vmatprep.subr.bf16.mxu0 0
  %560 = vmatpush1.bf16.msra.mxu0 0
  %561 = vmatprep.subr.bf16.mxu0 0
  %562 = vmatpush1.bf16.msra.mxu0 0
  %563 = vmatprep.subr.bf16.mxu0 0
  %564 = vmatpush1.bf16.msra.mxu0 0
  %565 = vmatprep.subr.bf16.mxu0 0
  %566 = vmatpush1.bf16.msra.mxu0 0
  %567 = vmatprep.subr.bf16.mxu0 0
  %568 = vmatpush1.bf16.msra.mxu0 0
  %569 = vmatprep.subr.bf16.mxu0 0
  %570 = vmatpush1.bf16.msra.mxu0 0
  %571 = vmatprep.subr.bf16.mxu0 0
  %572 = vmatpush1.bf16.msra.mxu0 0
  %573 = vmatprep.subr.bf16.mxu0 0
  %574 = vmatpush1.bf16.msra.mxu0 0
  %575 = vmatprep.subr.bf16.mxu0 0
  %576 = vmatpush1.bf16.msra.mxu0 0
  %577 = vmatprep.mubr.bf16.mxu0 0
  %578 = vmatmul.mubr.bf16.gmra.mrb[0].mxu0 %v540
  %v579 = vpop.f32.mrb[0].mxu0
  %v580 = vadd.f32 0.0, %v579
  %v581 = vpop.f32.mrb[0].mxu0
  %v582 = vpop.f32.mrb[0].mxu0
  %v583 = vadd.f32 0.0, %v582
  %v584 = vpop.f32.mrb[0].mxu0
  %585 = vmatprep.mubr.bf16.mxu0 0
  %586 = vmatmul.mubr.bf16.gmra.mrb[0].mxu0 %v543
  %v587 = vpop.f32.mrb[0].mxu0
  %v588 = vadd.f32 0.0, %v587
  %v589 = vpop.f32.mrb[0].mxu0
  %v590 = vpop.f32.mrb[0].mxu0
  %v591 = vadd.f32 0.0, %v590
  %v592 = vpop.f32.mrb[0].mxu0
  %593 = vdwg.mxu0
  %v594 = vadd.f32 %v515, %v580
  %v595 = vadd.f32 %v518, %v583
  %v596 = vadd.f32 %v523, %v588
  %v597 = vadd.f32 %v526, %v591
  %v598 = vpack.c.bf16 %v396, %v395
  %v599 = vpack.c.bf16 %v398, %v397
  %v600 = vld [vmem:[%s4 + $0x18] sm:$0xf]
  %v601 = vld [vmem:[%s4 + $0x1c] sm:$0xf]
  %v604 = vunpack.c.l.b16 %v600
  %v605 = vunpack.c.l.b16 %v601
  %v606 = vpack.c.b16 %v605, %v604
  %v609 = vsel %vm236, %v598, 0
  %v612 = vsel %vm236, %v599, 0
  %614 = vmatprep.subr.bf16.mxu0 0
  %615 = vmatpush1.bf16.msra.mxu0 %v606
  %616 = vmatprep.subr.bf16.mxu0 0
  %617 = vmatpush1.bf16.msra.mxu0 0
  %618 = vmatprep.subr.bf16.mxu0 0
  %619 = vmatpush1.bf16.msra.mxu0 0
  %620 = vmatprep.subr.bf16.mxu0 0
  %621 = vmatpush1.bf16.msra.mxu0 0
  %622 = vmatprep.subr.bf16.mxu0 0
  %623 = vmatpush1.bf16.msra.mxu0 0
  %624 = vmatprep.subr.bf16.mxu0 0
  %625 = vmatpush1.bf16.msra.mxu0 0
  %626 = vmatprep.subr.bf16.mxu0 0
  %627 = vmatpush1.bf16.msra.mxu0 0
  %628 = vmatprep.subr.bf16.mxu0 0
  %629 = vmatpush1.bf16.msra.mxu0 0
  %630 = vmatprep.subr.bf16.mxu0 0
  %631 = vmatpush1.bf16.msra.mxu0 0
  %632 = vmatprep.subr.bf16.mxu0 0
  %633 = vmatpush1.bf16.msra.mxu0 0
  %634 = vmatprep.subr.bf16.mxu0 0
  %635 = vmatpush1.bf16.msra.mxu0 0
  %636 = vmatprep.subr.bf16.mxu0 0
  %637 = vmatpush1.bf16.msra.mxu0 0
  %638 = vmatprep.subr.bf16.mxu0 0
  %639 = vmatpush1.bf16.msra.mxu0 0
  %640 = vmatprep.subr.bf16.mxu0 0
  %641 = vmatpush1.bf16.msra.mxu0 0
  %642 = vmatprep.subr.bf16.mxu0 0
  %643 = vmatpush1.bf16.msra.mxu0 0
  %644 = vmatprep.subr.bf16.mxu0 0
  %645 = vmatpush1.bf16.msra.mxu0 0
  %646 = vmatprep.mubr.bf16.mxu0 0
  %647 = vmatmul.mubr.bf16.gmra.mrb[0].mxu0 %v609
  %v648 = vpop.f32.mrb[0].mxu0
  %v649 = vadd.f32 0.0, %v648
  %v650 = vpop.f32.mrb[0].mxu0
  %v651 = vpop.f32.mrb[0].mxu0
  %v652 = vadd.f32 0.0, %v651
  %v653 = vpop.f32.mrb[0].mxu0
  %654 = vmatprep.mubr.bf16.mxu0 0
  %655 = vmatmul.mubr.bf16.gmra.mrb[0].mxu0 %v612
  %v656 = vpop.f32.mrb[0].mxu0
  %v657 = vadd.f32 0.0, %v656
  %v658 = vpop.f32.mrb[0].mxu0
  %v659 = vpop.f32.mrb[0].mxu0
  %v660 = vadd.f32 0.0, %v659
  %v661 = vpop.f32.mrb[0].mxu0
  %662 = vdwg.mxu0
  %v663 = vadd.f32 %v594, %v649
  %v664 = vadd.f32 %v595, %v652
  %v665 = vadd.f32 %v596, %v657
  %v666 = vadd.f32 %v597, %v660
  %vm667 = vcmask 261120
  %v668 = vsel %vm667, %v663, 0.0
  %v669 = vsel %vm667, %v664, 0.0
  %v670 = vadd.f32 %v668, %v669
  %v671 = vsel %vm667, %v665, 0.0
  %v672 = vadd.f32 %v670, %v671
  %v673 = vsel %vm667, %v666, 0.0
  %v674 = vadd.f32 %v672, %v673
  %v675 = vrot.slane %v674, 4
  %v676 = vadd.f32 %v674, %v675
  %v677 = vrot.slane %v676, 2
  %v678 = vadd.f32 %v676, %v677
  %v679 = vrot.slane %v678, 1
  %v680 = vadd.f32 %v678, %v679
  %v681 = vmul.f32 %v680, 0.03125
  %v682 = vmul.f32 %v663, %v663
  %v683 = vmul.f32 %v664, %v664
  %v684 = vmul.f32 %v665, %v665
  %v685 = vmul.f32 %v666, %v666
  %v686 = vsel %vm667, %v682, 0.0
  %v687 = vsel %vm667, %v683, 0.0
  %v688 = vadd.f32 %v686, %v687
  %v689 = vsel %vm667, %v684, 0.0
  %v690 = vadd.f32 %v688, %v689
  %v691 = vsel %vm667, %v685, 0.0
  %v692 = vadd.f32 %v690, %v691
  %v693 = vrot.slane %v692, 4
  %v694 = vadd.f32 %v692, %v693
  %v695 = vrot.slane %v694, 2
  %v696 = vadd.f32 %v694, %v695
  %v697 = vrot.slane %v696, 1
  %v698 = vadd.f32 %v696, %v697
  %v699 = vmul.f32 %v698, 0.03125
  %v700 = vmul.f32 %v681, %v681
  %v701 = vsub.f32 %v699, %v700
  %v702 = vmax.f32 %v701, 0.0
  %v703 = vld [vmem:[%s5] sm:$0x1]
  %v704 = vadd.f32 %v702, 1e-05
  %v705 = vrsqrt.pop %v704
  %v706 = vmul.f32 %v703, %v705
  %v707 = vld [vmem:[%s6] sm:$0x1]
  %v708 = vmul.f32 %v681, %v706
  %v709 = vsub.f32 %v707, %v708
  %v711 = vlaneseq
  %v712 = vshrl.u32 %v711, 7
  %v713 = vsub.s32 0, %v712
  %v714 = vrot.slane %v706, %v713
  %v716 = vmul.f32 %v663, %v714
  %v717 = vmul.f32 %v664, %v714
  %v718 = vmul.f32 %v665, %v714
  %v719 = vmul.f32 %v666, %v714
  %v721 = vlaneseq
  %v722 = vshrl.u32 %v721, 7
  %v723 = vsub.s32 0, %v722
  %v724 = vrot.slane %v709, %v723
  %v726 = vadd.f32 %v716, %v724
  %v727 = vadd.f32 %v717, %v724
  %v728 = vadd.f32 %v718, %v724
  %v729 = vadd.f32 %v719, %v724
  %v730 = vmax.f32 %v726, 0.0
  %v731 = vmax.f32 %v727, 0.0
  %v732 = vmax.f32 %v728, 0.0
  %v733 = vmax.f32 %v729, 0.0
  %v734 = vpack.c.bf16 %v730, %v730
  %v735 = vld [vmem:[%s7] sm:$0xf]
  %v736 = vld [vmem:[%s7 + $0x4] sm:$0xf]
  %v737 = vld [vmem:[%s7 + $0x8] sm:$0xf]
  %v738 = vld [vmem:[%s7 + $0xc] sm:$0xf]
  %v739 = vpack.c.bf16 %v731, %v731
  %v740 = vld [vmem:[%s7 + $0x10] sm:$0xf]
  %v741 = vld [vmem:[%s7 + $0x14] sm:$0xf]
  %v742 = vld [vmem:[%s7 + $0x18] sm:$0xf]
  %v743 = vld [vmem:[%s7 + $0x1c] sm:$0xf]
  %v748 = vunpack.c.l.b16 %v740
  %v749 = vunpack.c.l.b16 %v741
  %v750 = vunpack.c.l.b16 %v742
  %v751 = vunpack.c.l.b16 %v743
  %v752 = vpack.c.b16 %v749, %v748
  %v753 = vpack.c.b16 %v751, %v750
  %v757 = vsel %vm667, %v739, 0
  %759 = vmatprep.subr.bf16.mxu0 0
  %760 = vmatpush1.bf16.msra.mxu0 %v752
  %761 = vmatprep.subr.bf16.mxu0 0
  %762 = vmatpush1.bf16.msra.mxu0 %v753
  %763 = vmatprep.subr.bf16.mxu0 0
  %764 = vmatpush1.bf16.msra.mxu0 0
  %765 = vmatprep.subr.bf16.mxu0 0
  %766 = vmatpush1.bf16.msra.mxu0 0
  %767 = vmatprep.subr.bf16.mxu0 0
  %768 = vmatpush1.bf16.msra.mxu0 0
  %769 = vmatprep.subr.bf16.mxu0 0
  %770 = vmatpush1.bf16.msra.mxu0 0
  %771 = vmatprep.subr.bf16.mxu0 0
  %772 = vmatpush1.bf16.msra.mxu0 0
  %773 = vmatprep.subr.bf16.mxu0 0
  %774 = vmatpush1.bf16.msra.mxu0 0
  %775 = vmatprep.subr.bf16.mxu0 0
  %776 = vmatpush1.bf16.msra.mxu0 0
  %777 = vmatprep.subr.bf16.mxu0 0
  %778 = vmatpush1.bf16.msra.mxu0 0
  %779 = vmatprep.subr.bf16.mxu0 0
  %780 = vmatpush1.bf16.msra.mxu0 0
  %781 = vmatprep.subr.bf16.mxu0 0
  %782 = vmatpush1.bf16.msra.mxu0 0
  %783 = vmatprep.subr.bf16.mxu0 0
  %784 = vmatpush1.bf16.msra.mxu0 0
  %785 = vmatprep.subr.bf16.mxu0 0
  %786 = vmatpush1.bf16.msra.mxu0 0
  %787 = vmatprep.subr.bf16.mxu0 0
  %788 = vmatpush1.bf16.msra.mxu0 0
  %789 = vmatprep.subr.bf16.mxu0 0
  %790 = vmatpush1.bf16.msra.mxu0 0
  %791 = vmatprep.mubr.bf16.mxu0 0
  %792 = vmatmul.mubr.bf16.gmra.mrb[0].mxu0 %v757
  %v793 = vpop.f32.mrb[0].mxu0
  %v794 = vadd.f32 0.0, %v793
  %v795 = vpop.f32.mrb[0].mxu0
  %v796 = vpop.f32.mrb[0].mxu0
  %v797 = vpop.f32.mrb[0].mxu0
  %798 = vdwg.mxu0
  %v803 = vunpack.c.l.b16 %v735
  %v804 = vunpack.c.l.b16 %v736
  %v805 = vunpack.c.l.b16 %v737
  %v806 = vunpack.c.l.b16 %v738
  %v807 = vpack.c.b16 %v804, %v803
  %v808 = vpack.c.b16 %v806, %v805
  %v812 = vsel %vm667, %v734, 0
  %814 = vmatprep.subr.bf16.mxu0 0
  %815 = vmatpush1.bf16.msra.mxu0 %v807
  %816 = vmatprep.subr.bf16.mxu0 0
  %817 = vmatpush1.bf16.msra.mxu0 %v808
  %818 = vmatprep.subr.bf16.mxu0 0
  %819 = vmatpush1.bf16.msra.mxu0 0
  %820 = vmatprep.subr.bf16.mxu0 0
  %821 = vmatpush1.bf16.msra.mxu0 0
  %822 = vmatprep.subr.bf16.mxu0 0
  %823 = vmatpush1.bf16.msra.mxu0 0
  %824 = vmatprep.subr.bf16.mxu0 0
  %825 = vmatpush1.bf16.msra.mxu0 0
  %826 = vmatprep.subr.bf16.mxu0 0
  %827 = vmatpush1.bf16.msra.mxu0 0
  %828 = vmatprep.subr.bf16.mxu0 0
  %829 = vmatpush1.bf16.msra.mxu0 0
  %830 = vmatprep.subr.bf16.mxu0 0
  %831 = vmatpush1.bf16.msra.mxu0 0
  %832 = vmatprep.subr.bf16.mxu0 0
  %833 = vmatpush1.bf16.msra.mxu0 0
  %834 = vmatprep.subr.bf16.mxu0 0
  %835 = vmatpush1.bf16.msra.mxu0 0
  %836 = vmatprep.subr.bf16.mxu0 0
  %837 = vmatpush1.bf16.msra.mxu0 0
  %838 = vmatprep.subr.bf16.mxu0 0
  %839 = vmatpush1.bf16.msra.mxu0 0
  %840 = vmatprep.subr.bf16.mxu0 0
  %841 = vmatpush1.bf16.msra.mxu0 0
  %842 = vmatprep.subr.bf16.mxu0 0
  %843 = vmatpush1.bf16.msra.mxu0 0
  %844 = vmatprep.subr.bf16.mxu0 0
  %845 = vmatpush1.bf16.msra.mxu0 0
  %846 = vmatprep.mubr.bf16.mxu0 0
  %847 = vmatmul.mubr.bf16.gmra.mrb[0].mxu0 %v812
  %v848 = vpop.f32.mrb[0].mxu0
  %v849 = vadd.f32 %v794, %v848
  %v850 = vpop.f32.mrb[0].mxu0
  %v851 = vpop.f32.mrb[0].mxu0
  %v852 = vpop.f32.mrb[0].mxu0
  %853 = vdwg.mxu0
  %v854 = vpack.c.bf16 %v732, %v732
  %v855 = vld [vmem:[%s7 + $0x20] sm:$0xf]
  %v856 = vld [vmem:[%s7 + $0x24] sm:$0xf]
  %v857 = vld [vmem:[%s7 + $0x28] sm:$0xf]
  %v858 = vld [vmem:[%s7 + $0x2c] sm:$0xf]
  %v863 = vunpack.c.l.b16 %v855
  %v864 = vunpack.c.l.b16 %v856
  %v865 = vunpack.c.l.b16 %v857
  %v866 = vunpack.c.l.b16 %v858
  %v867 = vpack.c.b16 %v864, %v863
  %v868 = vpack.c.b16 %v866, %v865
  %v872 = vsel %vm667, %v854, 0
  %874 = vmatprep.subr.bf16.mxu0 0
  %875 = vmatpush1.bf16.msra.mxu0 %v867
  %876 = vmatprep.subr.bf16.mxu0 0
  %877 = vmatpush1.bf16.msra.mxu0 %v868
  %878 = vmatprep.subr.bf16.mxu0 0
  %879 = vmatpush1.bf16.msra.mxu0 0
  %880 = vmatprep.subr.bf16.mxu0 0
  %881 = vmatpush1.bf16.msra.mxu0 0
  %882 = vmatprep.subr.bf16.mxu0 0
  %883 = vmatpush1.bf16.msra.mxu0 0
  %884 = vmatprep.subr.bf16.mxu0 0
  %885 = vmatpush1.bf16.msra.mxu0 0
  %886 = vmatprep.subr.bf16.mxu0 0
  %887 = vmatpush1.bf16.msra.mxu0 0
  %888 = vmatprep.subr.bf16.mxu0 0
  %889 = vmatpush1.bf16.msra.mxu0 0
  %890 = vmatprep.subr.bf16.mxu0 0
  %891 = vmatpush1.bf16.msra.mxu0 0
  %892 = vmatprep.subr.bf16.mxu0 0
  %893 = vmatpush1.bf16.msra.mxu0 0
  %894 = vmatprep.subr.bf16.mxu0 0
  %895 = vmatpush1.bf16.msra.mxu0 0
  %896 = vmatprep.subr.bf16.mxu0 0
  %897 = vmatpush1.bf16.msra.mxu0 0
  %898 = vmatprep.subr.bf16.mxu0 0
  %899 = vmatpush1.bf16.msra.mxu0 0
  %900 = vmatprep.subr.bf16.mxu0 0
  %901 = vmatpush1.bf16.msra.mxu0 0
  %902 = vmatprep.subr.bf16.mxu0 0
  %903 = vmatpush1.bf16.msra.mxu0 0
  %904 = vmatprep.subr.bf16.mxu0 0
  %905 = vmatpush1.bf16.msra.mxu0 0
  %906 = vmatprep.mubr.bf16.mxu0 0
  %907 = vmatmul.mubr.bf16.gmra.mrb[0].mxu0 %v872
  %v908 = vpop.f32.mrb[0].mxu0
  %v909 = vadd.f32 0.0, %v908
  %v910 = vpop.f32.mrb[0].mxu0
  %v911 = vpop.f32.mrb[0].mxu0
  %v912 = vpop.f32.mrb[0].mxu0
  %913 = vdwg.mxu0
  %v914 = vadd.f32 %v849, %v909
  %v915 = vpack.c.bf16 %v733, %v733
  %v916 = vld [vmem:[%s7 + $0x30] sm:$0xf]
  %v917 = vld [vmem:[%s7 + $0x34] sm:$0xf]
  %v918 = vld [vmem:[%s7 + $0x38] sm:$0xf]
  %v919 = vld [vmem:[%s7 + $0x3c] sm:$0xf]
  %v924 = vunpack.c.l.b16 %v916
  %v925 = vunpack.c.l.b16 %v917
  %v926 = vunpack.c.l.b16 %v918
  %v927 = vunpack.c.l.b16 %v919
  %v928 = vpack.c.b16 %v925, %v924
  %v929 = vpack.c.b16 %v927, %v926
  %v933 = vsel %vm667, %v915, 0
  %935 = vmatprep.subr.bf16.mxu0 0
  %936 = vmatpush1.bf16.msra.mxu0 %v928
  %937 = vmatprep.subr.bf16.mxu0 0
  %938 = vmatpush1.bf16.msra.mxu0 %v929
  %939 = vmatprep.subr.bf16.mxu0 0
  %940 = vmatpush1.bf16.msra.mxu0 0
  %941 = vmatprep.subr.bf16.mxu0 0
  %942 = vmatpush1.bf16.msra.mxu0 0
  %943 = vmatprep.subr.bf16.mxu0 0
  %944 = vmatpush1.bf16.msra.mxu0 0
  %945 = vmatprep.subr.bf16.mxu0 0
  %946 = vmatpush1.bf16.msra.mxu0 0
  %947 = vmatprep.subr.bf16.mxu0 0
  %948 = vmatpush1.bf16.msra.mxu0 0
  %949 = vmatprep.subr.bf16.mxu0 0
  %950 = vmatpush1.bf16.msra.mxu0 0
  %951 = vmatprep.subr.bf16.mxu0 0
  %952 = vmatpush1.bf16.msra.mxu0 0
  %953 = vmatprep.subr.bf16.mxu0 0
  %954 = vmatpush1.bf16.msra.mxu0 0
  %955 = vmatprep.subr.bf16.mxu0 0
  %956 = vmatpush1.bf16.msra.mxu0 0
  %957 = vmatprep.subr.bf16.mxu0 0
  %958 = vmatpush1.bf16.msra.mxu0 0
  %959 = vmatprep.subr.bf16.mxu0 0
  %960 = vmatpush1.bf16.msra.mxu0 0
  %961 = vmatprep.subr.bf16.mxu0 0
  %962 = vmatpush1.bf16.msra.mxu0 0
  %963 = vmatprep.subr.bf16.mxu0 0
  %964 = vmatpush1.bf16.msra.mxu0 0
  %965 = vmatprep.subr.bf16.mxu0 0
  %966 = vmatpush1.bf16.msra.mxu0 0
  %967 = vmatprep.mubr.bf16.mxu0 0
  %968 = vmatmul.mubr.bf16.gmra.mrb[0].mxu0 %v933
  %v969 = vpop.f32.mrb[0].mxu0
  %v970 = vadd.f32 0.0, %v969
  %v971 = vpop.f32.mrb[0].mxu0
  %v972 = vpop.f32.mrb[0].mxu0
  %v973 = vpop.f32.mrb[0].mxu0
  %974 = vdwg.mxu0
  %v975 = vadd.f32 %v914, %v970
  %vm976 = vcmask 523264
  %v977 = vsel %vm976, %v975, 0.0
  %v978 = vrot.slane %v977, 4
  %v979 = vadd.f32 %v977, %v978
  %v980 = vrot.slane %v979, 2
  %v981 = vadd.f32 %v979, %v980
  %v982 = vrot.slane %v981, 1
  %v983 = vadd.f32 %v981, %v982
  %v984 = vmul.f32 %v983, 0.125
  %v985 = vmul.f32 %v975, %v975
  %v986 = vsel %vm976, %v985, 0.0
  %v987 = vrot.slane %v986, 4
  %v988 = vadd.f32 %v986, %v987
  %v989 = vrot.slane %v988, 2
  %v990 = vadd.f32 %v988, %v989
  %v991 = vrot.slane %v990, 1
  %v992 = vadd.f32 %v990, %v991
  %v993 = vmul.f32 %v992, 0.125
  %v994 = vmul.f32 %v984, %v984
  %v995 = vsub.f32 %v993, %v994
  %v996 = vmax.f32 %v995, 0.0
  %v997 = vld [vmem:[%s8] sm:$0x1]
  %v998 = vadd.f32 %v996, 1e-05
  %v999 = vrsqrt.pop %v998
  %v1000 = vmul.f32 %v997, %v999
  %v1001 = vld [vmem:[%s9] sm:$0x1]
  %v1002 = vmul.f32 %v984, %v1000
  %v1003 = vsub.f32 %v1001, %v1002
  %v1005 = vlaneseq
  %v1006 = vshrl.u32 %v1005, 7
  %v1007 = vsub.s32 0, %v1006
  %v1008 = vrot.slane %v1000, %v1007
  %v1010 = vmul.f32 %v975, %v1008
  %v1012 = vlaneseq
  %v1013 = vshrl.u32 %v1012, 7
  %v1014 = vsub.s32 0, %v1013
  %v1015 = vrot.slane %v1003, %v1014
  %v1017 = vadd.f32 %v1010, %v1015
  %v1018 = vmax.f32 %v1017, 0.0
  %v1019 = vld [vmem:[%s10] sm:$0xff]
  %v1020 = vmul.f32 %v1018, %v1019
  %v1021 = vpack.c.bf16 %v1020, %v1020
  %v1022 = vld [vmem:[%s12] sm:$0xf]
  %vm1023 = vcmask 64512
  %v1025 = vsel %vm1023, %v1022, 0
  %vm1027 = vcmask 1043456
  %v1029 = vsel %vm1027, %v1021, 0
  %1031 = vmatprep.subr.bf16.mxu0 0
  %1032 = vmatpush1.bf16.msra.mxu0 %v1029
  %1033 = vmatprep.subr.bf16.mxu0 0
  %1034 = vmatpush1.bf16.msra.mxu0 0
  %1035 = vmatprep.subr.bf16.mxu0 0
  %1036 = vmatpush1.bf16.msra.mxu0 0
  %1037 = vmatprep.subr.bf16.mxu0 0
  %1038 = vmatpush1.bf16.msra.mxu0 0
  %1039 = vmatprep.subr.bf16.mxu0 0
  %1040 = vmatpush1.bf16.msra.mxu0 0
  %1041 = vmatprep.subr.bf16.mxu0 0
  %1042 = vmatpush1.bf16.msra.mxu0 0
  %1043 = vmatprep.subr.bf16.mxu0 0
  %1044 = vmatpush1.bf16.msra.mxu0 0
  %1045 = vmatprep.subr.bf16.mxu0 0
  %1046 = vmatpush1.bf16.msra.mxu0 0
  %1047 = vmatprep.subr.bf16.mxu0 0
  %1048 = vmatpush1.bf16.msra.mxu0 0
  %1049 = vmatprep.subr.bf16.mxu0 0
  %1050 = vmatpush1.bf16.msra.mxu0 0
  %1051 = vmatprep.subr.bf16.mxu0 0
  %1052 = vmatpush1.bf16.msra.mxu0 0
  %1053 = vmatprep.subr.bf16.mxu0 0
  %1054 = vmatpush1.bf16.msra.mxu0 0
  %1055 = vmatprep.subr.bf16.mxu0 0
  %1056 = vmatpush1.bf16.msra.mxu0 0
  %1057 = vmatprep.subr.bf16.mxu0 0
  %1058 = vmatpush1.bf16.msra.mxu0 0
  %1059 = vmatprep.subr.bf16.mxu0 0
  %1060 = vmatpush1.bf16.msra.mxu0 0
  %1061 = vmatprep.subr.bf16.mxu0 0
  %1062 = vmatpush1.bf16.msra.mxu0 0
  %1063 = vmatprep.mubr.bf16.mxu0 0
  %1064 = vmatmul.mubr.bf16.gmra.mrb[0].mxu0 %v1025
  %v1065 = vpop.f32.mrb[0].mxu0
  %v1066 = vadd.f32 0.0, %v1065
  %v1067 = vpop.f32.mrb[0].mxu0
  %v1068 = vpop.f32.mrb[0].mxu0
  %v1069 = vpop.f32.mrb[0].mxu0
  %1070 = vdwg.mxu0
  %v1071 = vsel %vm976, %v1066, 0.0
  %1072 = vadd.xlane.f32.xlu0 %v1071
  %v1073 = vpop.xlane.xlu0 %1072
  %v1074 = vld [vmem:[#allocation2] sm:$0x1]
  %v1076 = vlaneseq
  %v1077 = vshrl.u32 %v1076, 7
  %v1078 = vsub.s32 0, %v1077
  %v1079 = vrot.slane %v1074, %v1078
  %v1081 = vadd.f32 %v1073, %v1079
  %v1082 = vxor.u32 %v1081, 2147483648
  %v1083 = vmul.f32 %v1082, 1.442695
  %v1084 = vpow.pop %v1083
  %v1085 = vadd.f32 %v1084, 1.0
  %v1086 = vrcp.pop %v1085
  %v1087 = vmul.f32 1.0, %v1086
  %1088 = vst.msk [vmem:[%s13] sm:$0xff] %vm976, %v1018
  %1090 = vset.pattern.permute.xlu0 0
  %1091 = vperm.xlu0 %1090, %v1087
  %v1092 = vpop.permute.xlu0 %1091
  %vm1094 = vcmask 1048064
  %1095 = vst.msk [vmem:[%s13] sm:$0xff] %vm1094, %v1092
  // Predicated region
  $region54: #{vae_gan_discriminator_forward.1} parent=0 // pred_check
    _
  $region55: #{vae_gan_discriminator_forward.1} parent=0 // pred_check_branch
    %1097 = sbr.rel (0) target = $region57
  $region56: #{vae_gan_discriminator_forward.1} parent=0 // pred_region
    _
  $region57: #{vae_gan_discriminator_forward.1} parent=0 // pred_fallthru
    _
  // Predicated region
  $region58: #{vae_gan_discriminator_forward.1} parent=0 // pred_check
    _
  $region59: #{vae_gan_discriminator_forward.1} parent=0 // pred_check_branch
    %1099 = sbr.rel (0) target = $region61
  $region60: #{vae_gan_discriminator_forward.1} parent=0 // pred_region
    _
  $region61: #{vae_gan_discriminator_forward.1} parent=0 // pred_fallthru
    _

</llo_original>
